<compile_context>
chip_gen: v5e
topology: v5e:2x2
jax: 0.10.0
libtpu: 0.0.40
codegen_flags: <defaults>
</compile_context>

<pallas_src>
import functools

import jax
import jax.numpy as jnp
from jax import lax
from jax.experimental import pallas as pl
from jax.experimental.pallas import tpu as pltpu


def _conv_bn_kernel(x_ref, w_ref, bias_ref, o_ref, *, K, T_tile, stride):
    # x_ref:    (T_pad, V, C_in)    bf16, full (padded) time axis for one sample
    # w_ref:    (K*C_in, C_out)     bf16, BN scale pre-folded into the weights
    # bias_ref: (1, 1, C_out)       f32, conv bias + BN shift folded together
    # o_ref:    (T_tile, V, C_out)  f32 output tile
    tt = pl.program_id(1)
    t0 = pl.multiple_of(tt * (T_tile * stride), T_tile * stride)

    # im2col over the K temporal taps: a single (T_tile, V, K*C_in) operand so the
    # MXU sees ONE matmul with contraction depth K*C_in instead of K depth-C_in ones.
    if stride == 1:
        taps = [x_ref[pl.ds(t0 + k, T_tile), :, :] for k in range(K)]
    else:
        # TODO(synk): for stride > 1 the whole T_pad slab is still DMA'd; a
        # wrapper-side decimation would cut HBM traffic by ~stride x.
        taps = [x_ref[pl.ds(t0 + k, T_tile, stride), :, :] for k in range(K)]
    xs = jnp.concatenate(taps, axis=-1)                       # (T_tile, V, K*C_in)

    acc = lax.dot_general(                                    # f32 accumulation on MXU
        xs, w_ref[...],
        dimension_numbers=(((2,), (0,)), ((), ())),
        preferred_element_type=jnp.float32,
    )                                                         # (T_tile, V, C_out)
    o_ref[...] = (acc + bias_ref[...]).astype(o_ref.dtype)


def _pick_t_tile(t_out):
    """Largest divisor of t_out <= a moderate target, so the grid has several T steps."""
    if t_out <= 1:
        return max(t_out, 1)
    target = max(8, min(64, t_out // 2))
    t = min(target, t_out)
    while t_out % t:
        t -= 1
    return t


def unit_skip_forward(x_nchw, w_kco, conv_bias, bn_gamma, bn_beta, bn_mean, bn_var,
                      *, stride=1, eps=1e-5):
    """x_nchw: (N, C_in, T, V)  ->  (N, C_out, T_out, V)"""
    N, Cin, T, V = x_nchw.shape
    K, Cin_w, Cout = w_kco.shape
    assert Cin_w == Cin
    pad = (K - 1) // 2
    T_pad = T + 2 * pad
    T_out = (T_pad - K) // stride + 1

    # Eval-mode BN folded into the conv:
    #   conv(x, w) * s == conv(x, w * s)  -> scale folded into the weights,
    #   shift folded into a single per-channel f32 bias.
    inv_std = 1.0 / jnp.sqrt(bn_var + eps)
    scale = bn_gamma * inv_std                                           # (Cout,)
    bias = ((conv_bias - bn_mean) * scale + bn_beta).reshape(1, 1, Cout).astype(jnp.float32)
    w2d = (w_kco * scale[None, None, :]).reshape(K * Cin, Cout).astype(jnp.bfloat16)

    # NCHW -> (N, T_pad, V, C_in), cast to bf16 for DMA/MXU (f32 accumulate in-kernel).
    x = jnp.transpose(x_nchw, (0, 2, 3, 1))
    x = jnp.pad(x, ((0, 0), (pad, pad), (0, 0), (0, 0))).astype(jnp.bfloat16)

    T_tile = _pick_t_tile(T_out)
    n_tt = T_out // T_tile

    kernel = functools.partial(_conv_bn_kernel, K=K, T_tile=T_tile, stride=stride)
    out = pl.pallas_call(
        kernel,
        out_shape=jax.ShapeDtypeStruct((N, T_out, V, Cout), jnp.float32),
        grid=(N, n_tt),
        in_specs=[
            # Input block index is constant in t -> the (T_pad, V, Cin) slab is
            # DMA'd once per sample and reused across its T tiles.
            pl.BlockSpec((None, T_pad, V, Cin), lambda n, t: (n, 0, 0, 0)),
            pl.BlockSpec((K * Cin, Cout), lambda n, t: (0, 0)),
            pl.BlockSpec((1, 1, Cout), lambda n, t: (0, 0, 0)),
        ],
        out_specs=pl.BlockSpec((None, T_tile, V, Cout), lambda n, t: (n, t, 0, 0)),
        compiler_params=pltpu.CompilerParams(
            dimension_semantics=("parallel", "parallel")),
    )(x, w2d, bias)

    # (N, T_out, V, C_out) -> NCHW
    return jnp.transpose(out, (0, 3, 1, 2))


def _reference(x_nchw, w_kco, conv_bias, bn_gamma, bn_beta, bn_mean, bn_var,
               *, stride=1, eps=1e-5):
    K, Cin, Cout = w_kco.shape
    pad = (K - 1) // 2
    # PyTorch conv weight layout (C_out, C_in, K, 1)
    w_oikh = jnp.transpose(w_kco, (2, 1, 0))[..., None]
    y = lax.conv_general_dilated(
        x_nchw, w_oikh,
        window_strides=(stride, 1),
        padding=((pad, pad), (0, 0)),
        dimension_numbers=("NCHW", "OIHW", "NCHW"),
        precision=lax.Precision.HIGHEST,
    ) + conv_bias.reshape(1, -1, 1, 1)
    inv_std = 1.0 / jnp.sqrt(bn_var + eps)
    return ((y - bn_mean.reshape(1, -1, 1, 1)) * (bn_gamma * inv_std).reshape(1, -1, 1, 1)
            + bn_beta.reshape(1, -1, 1, 1))


if __name__ == "__main__":
    N, Cin, Cout, T, V, K, stride = 2, 4, 8, 16, 16, 9, 1

    key = jax.random.PRNGKey(0)
    kx, kw = jax.random.split(key)

    x = jax.random.normal(kx, (N, Cin, T, V), dtype=jnp.float32)

    # Conv weight: kaiming_normal_(mode='fan_out') -> std = sqrt(2 / (Cout*K*1))
    fan_out = Cout * K * 1
    w_std = (2.0 / fan_out) ** 0.5
    w_kco = jax.random.normal(kw, (K, Cin, Cout), dtype=jnp.float32) * w_std
    conv_bias = jnp.zeros((Cout,), jnp.float32)            # conv_init: bias = 0

    bn_gamma = jnp.ones((Cout,), jnp.float32)               # bn_init(bn, 1)
    bn_beta = jnp.zeros((Cout,), jnp.float32)
    bn_mean = jnp.zeros((Cout,), jnp.float32)               # fresh running stats
    bn_var = jnp.ones((Cout,), jnp.float32)

    out = unit_skip_forward(x, w_kco, conv_bias, bn_gamma, bn_beta, bn_mean, bn_var,
                            stride=stride)
    out = jax.block_until_ready(out)

    # Reference on the same bf16-quantized operands (the kernel intentionally
    # casts x/w to bf16 for perf; f32 math everywhere else), so the comparison
    # checks the kernel math itself with a tight tolerance.
    x_q = x.astype(jnp.bfloat16).astype(jnp.float32)
    w_q = w_kco.astype(jnp.bfloat16).astype(jnp.float32)
    ref = _reference(x_q, w_q, conv_bias, bn_gamma, bn_beta, bn_mean, bn_var,
                     stride=stride)
    ref = jax.block_until_ready(ref)

    assert out.shape == (N, Cout, T, V), out.shape
    err = float(jnp.max(jnp.abs(out - ref)))
    assert jnp.allclose(out, ref, atol=1e-3, rtol=1e-3), err
    print("KERNEL_OK")
</pallas_src>

<mosaic_0001>
module attributes {stable_mosaic.version = 11 : i64} {
  func.func @_conv_bn_kernel(%arg0: i32, %arg1: i32, %arg2: memref<1x24x16x4xbf16, #tpu.memory_space<vmem>>, %arg3: memref<36x8xbf16, #tpu.memory_space<vmem>>, %arg4: memref<1x1x8xf32, #tpu.memory_space<vmem>>, %arg5: memref<1x8x16x8xf32, #tpu.memory_space<vmem>>) attributes {dimension_semantics = [#tpu.dimension_semantics<parallel>, #tpu.dimension_semantics<parallel>], iteration_bounds = array<i64: 2, 2>, scalar_prefetch = 0 : i64, scratch_operands = 0 : i64, tpu.core_type = #tpu.core_type<tc>, window_params = [{transform_indices = @transform_0, window_bounds = array<i64: 1, 24, 16, 4>}, {pipeline_mode = #tpu.pipeline_mode<synchronous>, transform_indices = @transform_1, window_bounds = array<i64: 36, 8>}, {pipeline_mode = #tpu.pipeline_mode<synchronous>, transform_indices = @transform_2, window_bounds = array<i64: 1, 1, 8>}, {transform_indices = @transform_3, window_bounds = array<i64: 1, 8, 16, 8>}]} {
    %c8_i32 = arith.constant 8 : i32
    %0 = arith.muli %arg1, %c8_i32 : i32
    %1 = tpu.assume_multiple %0, 8 : i32
    %c0_i32 = arith.constant 0 : i32
    %2 = arith.addi %1, %c0_i32 : i32
    %c0 = arith.constant 0 : index
    %3 = arith.index_cast %2 : i32 to index
    %c0_0 = arith.constant 0 : index
    %c0_1 = arith.constant 0 : index
    %4 = vector.load %arg2[%c0, %3, %c0_0, %c0_1] : memref<1x24x16x4xbf16, #tpu.memory_space<vmem>>, vector<1x8x16x4xbf16>
    %5 = vector.shape_cast %4 : vector<1x8x16x4xbf16> to vector<8x16x4xbf16>
    %c1_i32 = arith.constant 1 : i32
    %6 = arith.addi %1, %c1_i32 : i32
    %c0_2 = arith.constant 0 : index
    %7 = arith.index_cast %6 : i32 to index
    %c0_3 = arith.constant 0 : index
    %c0_4 = arith.constant 0 : index
    %8 = vector.load %arg2[%c0_2, %7, %c0_3, %c0_4] : memref<1x24x16x4xbf16, #tpu.memory_space<vmem>>, vector<1x8x16x4xbf16>
    %9 = vector.shape_cast %8 : vector<1x8x16x4xbf16> to vector<8x16x4xbf16>
    %c2_i32 = arith.constant 2 : i32
    %10 = arith.addi %1, %c2_i32 : i32
    %c0_5 = arith.constant 0 : index
    %11 = arith.index_cast %10 : i32 to index
    %c0_6 = arith.constant 0 : index
    %c0_7 = arith.constant 0 : index
    %12 = vector.load %arg2[%c0_5, %11, %c0_6, %c0_7] : memref<1x24x16x4xbf16, #tpu.memory_space<vmem>>, vector<1x8x16x4xbf16>
    %13 = vector.shape_cast %12 : vector<1x8x16x4xbf16> to vector<8x16x4xbf16>
    %c3_i32 = arith.constant 3 : i32
    %14 = arith.addi %1, %c3_i32 : i32
    %c0_8 = arith.constant 0 : index
    %15 = arith.index_cast %14 : i32 to index
    %c0_9 = arith.constant 0 : index
    %c0_10 = arith.constant 0 : index
    %16 = vector.load %arg2[%c0_8, %15, %c0_9, %c0_10] : memref<1x24x16x4xbf16, #tpu.memory_space<vmem>>, vector<1x8x16x4xbf16>
    %17 = vector.shape_cast %16 : vector<1x8x16x4xbf16> to vector<8x16x4xbf16>
    %c4_i32 = arith.constant 4 : i32
    %18 = arith.addi %1, %c4_i32 : i32
    %c0_11 = arith.constant 0 : index
    %19 = arith.index_cast %18 : i32 to index
    %c0_12 = arith.constant 0 : index
    %c0_13 = arith.constant 0 : index
    %20 = vector.load %arg2[%c0_11, %19, %c0_12, %c0_13] : memref<1x24x16x4xbf16, #tpu.memory_space<vmem>>, vector<1x8x16x4xbf16>
    %21 = vector.shape_cast %20 : vector<1x8x16x4xbf16> to vector<8x16x4xbf16>
    %c5_i32 = arith.constant 5 : i32
    %22 = arith.addi %1, %c5_i32 : i32
    %c0_14 = arith.constant 0 : index
    %23 = arith.index_cast %22 : i32 to index
    %c0_15 = arith.constant 0 : index
    %c0_16 = arith.constant 0 : index
    %24 = vector.load %arg2[%c0_14, %23, %c0_15, %c0_16] : memref<1x24x16x4xbf16, #tpu.memory_space<vmem>>, vector<1x8x16x4xbf16>
    %25 = vector.shape_cast %24 : vector<1x8x16x4xbf16> to vector<8x16x4xbf16>
    %c6_i32 = arith.constant 6 : i32
    %26 = arith.addi %1, %c6_i32 : i32
    %c0_17 = arith.constant 0 : index
    %27 = arith.index_cast %26 : i32 to index
    %c0_18 = arith.constant 0 : index
    %c0_19 = arith.constant 0 : index
    %28 = vector.load %arg2[%c0_17, %27, %c0_18, %c0_19] : memref<1x24x16x4xbf16, #tpu.memory_space<vmem>>, vector<1x8x16x4xbf16>
    %29 = vector.shape_cast %28 : vector<1x8x16x4xbf16> to vector<8x16x4xbf16>
    %c7_i32 = arith.constant 7 : i32
    %30 = arith.addi %1, %c7_i32 : i32
    %c0_20 = arith.constant 0 : index
    %31 = arith.index_cast %30 : i32 to index
    %c0_21 = arith.constant 0 : index
    %c0_22 = arith.constant 0 : index
    %32 = vector.load %arg2[%c0_20, %31, %c0_21, %c0_22] : memref<1x24x16x4xbf16, #tpu.memory_space<vmem>>, vector<1x8x16x4xbf16>
    %33 = vector.shape_cast %32 : vector<1x8x16x4xbf16> to vector<8x16x4xbf16>
    %c8_i32_23 = arith.constant 8 : i32
    %34 = arith.addi %1, %c8_i32_23 : i32
    %c0_24 = arith.constant 0 : index
    %35 = arith.index_cast %34 : i32 to index
    %c0_25 = arith.constant 0 : index
    %c0_26 = arith.constant 0 : index
    %36 = vector.load %arg2[%c0_24, %35, %c0_25, %c0_26] : memref<1x24x16x4xbf16, #tpu.memory_space<vmem>>, vector<1x8x16x4xbf16>
    %37 = vector.shape_cast %36 : vector<1x8x16x4xbf16> to vector<8x16x4xbf16>
    %38 = tpu.concatenate %5, %9, %13, %17, %21, %25, %29, %33, %37 in 2 : vector<8x16x4xbf16>, vector<8x16x4xbf16>, vector<8x16x4xbf16>, vector<8x16x4xbf16>, vector<8x16x4xbf16>, vector<8x16x4xbf16>, vector<8x16x4xbf16>, vector<8x16x4xbf16>, vector<8x16x4xbf16> -> vector<8x16x36xbf16>
    %c0_27 = arith.constant 0 : index
    %c0_28 = arith.constant 0 : index
    %39 = vector.load %arg3[%c0_27, %c0_28] : memref<36x8xbf16, #tpu.memory_space<vmem>>, vector<36x8xbf16>
    %cst = arith.constant dense<0.000000e+00> : vector<8x16x8xf32>
    %40 = tpu.matmul %38, %39, %cst {dimension_numbers = #tpu.dot_dimension_numbers<[2], [0], [0, 1], [1], [0, 0, 0, 1, 1, 1], [], []>} : vector<8x16x36xbf16>, vector<36x8xbf16>, vector<8x16x8xf32> -> vector<8x16x8xf32>
    %c0_29 = arith.constant 0 : index
    %c0_30 = arith.constant 0 : index
    %c0_31 = arith.constant 0 : index
    %41 = vector.load %arg4[%c0_29, %c0_30, %c0_31] : memref<1x1x8xf32, #tpu.memory_space<vmem>>, vector<1x1x8xf32>
    %42 = vector.broadcast %41 : vector<1x1x8xf32> to vector<8x16x8xf32>
    %43 = arith.addf %40, %42 : vector<8x16x8xf32>
    %c0_32 = arith.constant 0 : index
    %c0_33 = arith.constant 0 : index
    %c0_34 = arith.constant 0 : index
    %c0_35 = arith.constant 0 : index
    %44 = vector.load %arg5[%c0_32, %c0_33, %c0_34, %c0_35] : memref<1x8x16x8xf32, #tpu.memory_space<vmem>>, vector<1x8x16x8xf32>
    %45 = vector.shape_cast %44 : vector<1x8x16x8xf32> to vector<8x16x8xf32>
    %46 = vector.shape_cast %43 : vector<8x16x8xf32> to vector<1x8x16x8xf32>
    tpu.vector_store %arg5[%c0_32, %c0_33, %c0_34, %c0_35], %46 {strides = array<i32>} : memref<1x8x16x8xf32, #tpu.memory_space<vmem>>, vector<1x8x16x8xf32>,
    return
  }
  func.func @transform_0(%arg0: i32, %arg1: i32) -> (i32, i32, i32, i32) {
    %c0_i32 = arith.constant 0 : i32
    %c0_i32_0 = arith.constant 0 : i32
    %c0_i32_1 = arith.constant 0 : i32
    %c0_i32_2 = arith.constant 0 : i32
    return %arg0, %c0_i32, %c0_i32_0, %c0_i32_1 : i32, i32, i32, i32
  }
  func.func @transform_1(%arg0: i32, %arg1: i32) -> (i32, i32) {
    %c0_i32 = arith.constant 0 : i32
    %c0_i32_0 = arith.constant 0 : i32
    %c0_i32_1 = arith.constant 0 : i32
    return %c0_i32, %c0_i32_0 : i32, i32
  }
  func.func @transform_2(%arg0: i32, %arg1: i32) -> (i32, i32, i32) {
    %c0_i32 = arith.constant 0 : i32
    %c0_i32_0 = arith.constant 0 : i32
    %c0_i32_1 = arith.constant 0 : i32
    %c0_i32_2 = arith.constant 0 : i32
    return %c0_i32, %c0_i32_0, %c0_i32_1 : i32, i32, i32
  }
  func.func @transform_3(%arg0: i32, %arg1: i32) -> (i32, i32, i32, i32) {
    %c0_i32 = arith.constant 0 : i32
    %c0_i32_0 = arith.constant 0 : i32
    %c0_i32_1 = arith.constant 0 : i32
    return %arg0, %arg1, %c0_i32, %c0_i32_0 : i32, i32, i32, i32
  }
}

</mosaic_0001>

<llo_original>
// kernel: tpu_custom_call.1
$region0: #{tpu_custom_call.1}
  #allocation0 [shape = 'u32[]', space=smem, size = 0x4, offset = 0x4, fixed_abs, tag = 'smem constant byte address 0x4 - core index']
  #allocation1 [shape = 'u32[72,128]{1,0:T(1,128)}', space=vmem, size = 0x9000, scoped, tag = 'internal scratch']
  %s0 = inlined_call_operand.vmem [shape: bf16[2,24,16,4], index: 0, kind: input, shape index: {}]
  %s1 = inlined_call_operand.vmem [shape: bf16[36,8], index: 1, kind: input, shape index: {}]
  %s2 = inlined_call_operand.vmem [shape: f32[1,1,8], index: 2, kind: input, shape index: {}]
  %s3 = inlined_call_operand.vmem [shape: f32[2,16,16,8], index: 3, kind: output, shape index: {}]
  %s4 = sld [smem:[#allocation0]]
  $region45: #{tpu_custom_call.1} parent=0
    _
  %s6 = ssub.s32 1, %s4
  %s7 = scalar_select 0, %s6, %s4
  loop: start=0, step=1, limit=6
  $region2: #{tpu_custom_call.1} parent=0 // loop_pre_header
    _
  $region3: #{tpu_custom_call.1} parent=0 // loop_header
    %s9 = sphi 0, %s13
    %p10 = scmp.ge.s32.totalorder %s9, 6
    %s16 = sphi 0, %s28
    %s17 = sphi 0, %s24
    %s18 = sphi 0, %s16
    %s19 = sphi 0, %s17
    %s20 = sphi 0, %s18
    %s21 = sphi 0, %s19
    %s31 = sphi 0, %s33
    %s34 = sphi 0, %s31
    %s35 = sphi 0, %s34
    %s51 = sphi 0, %s35
    %s55 = sphi 0, %s55
    %s57 = sphi 0, %s55
    %s58 = sphi 0, %s57
    %s72 = sphi 0, %s58
    %s76 = sphi 0, %s76
    %s78 = sphi 0, %s76
    %s79 = sphi 0, %s78
    %s93 = sphi 0, %s79
    %s101 = sphi 0, %s103
    %s104 = sphi 0, %s101
    %s105 = sphi 0, %s104
    %s121 = sphi 0, %s105
  $region4: #{tpu_custom_call.1} parent=0 // loop_header_branch
    %12 = sbr.rel (%p10) target = $region8
  $region5: #{tpu_custom_call.1} parent=0 // loop_body
    %s14 = ssub.s32 %s9, 1
    %s15 = ssub.s32 %s9, 2
    %s22 = sadd.s32 1, %s17
    %p23 = scmp.ge.s32.totalorder %s22, 2
    %s24 = scalar_select %p23, 0, %s22
    %s25 = sadd.s32 1, %s16
    %s26 = scalar_select %p23, %s25, %s16
    %p27 = scmp.ge.s32.totalorder %s26, 2
    %s28 = scalar_select %p27, 0, %s26
    %s29 = ssub.s32 %s16, %s28
    %p30 = scmp.eq.s32.totalorder %s29, 0
    %s32 = sadd.s32 %s31, 1
    %s33 = scalar_select %p30, %s31, %s32
    %p36 = pneg %p30
    %p37 = scmp.eq.s32.totalorder %s9, 3
    %p38 = por %p36, %p37
    %p39 = scmp.ne.s32.totalorder %s31, %s34
    %p40 = scmp.eq.s32.totalorder %s9, 0
    %p41 = por %p39, %p40
    %p42 = scmp.ne.s32.totalorder %s31, %s34
    %p43 = scmp.eq.s32.totalorder %s14, 3
    %p44 = por %p42, %p43
    %p45 = scmp.ne.s32.totalorder %s34, %s35
    %p46 = scmp.eq.s32.totalorder %s14, 0
    %p47 = por %p45, %p46
    %p48 = scmp.ne.s32.totalorder %s34, %s35
    %p49 = scmp.eq.s32.totalorder %s15, 3
    %p50 = por %p48, %p49
    %p52 = scmp.ne.s32.totalorder %s35, %s51
    %p53 = scmp.eq.s32.totalorder %s15, 0
    %p54 = por %p52, %p53
    %s56 = sadd.s32 %s55, 1
    %p59 = scmp.eq.s32.totalorder %s9, 3
    %p60 = scmp.ne.s32.totalorder %s55, %s57
    %p61 = scmp.eq.s32.totalorder %s9, 0
    %p62 = por %p60, %p61
    %p63 = scmp.ne.s32.totalorder %s55, %s57
    %p64 = scmp.eq.s32.totalorder %s14, 3
    %p65 = por %p63, %p64
    %p66 = scmp.ne.s32.totalorder %s57, %s58
    %p67 = scmp.eq.s32.totalorder %s14, 0
    %p68 = por %p66, %p67
    %p69 = scmp.ne.s32.totalorder %s57, %s58
    %p70 = scmp.eq.s32.totalorder %s15, 3
    %p71 = por %p69, %p70
    %p73 = scmp.ne.s32.totalorder %s58, %s72
    %p74 = scmp.eq.s32.totalorder %s15, 0
    %p75 = por %p73, %p74
    %s77 = sadd.s32 %s76, 1
    %p80 = scmp.eq.s32.totalorder %s9, 3
    %p81 = scmp.ne.s32.totalorder %s76, %s78
    %p82 = scmp.eq.s32.totalorder %s9, 0
    %p83 = por %p81, %p82
    %p84 = scmp.ne.s32.totalorder %s76, %s78
    %p85 = scmp.eq.s32.totalorder %s14, 3
    %p86 = por %p84, %p85
    %p87 = scmp.ne.s32.totalorder %s78, %s79
    %p88 = scmp.eq.s32.totalorder %s14, 0
    %p89 = por %p87, %p88
    %p90 = scmp.ne.s32.totalorder %s78, %s79
    %p91 = scmp.eq.s32.totalorder %s15, 3
    %p92 = por %p90, %p91
    %p94 = scmp.ne.s32.totalorder %s79, %s93
    %p95 = scmp.eq.s32.totalorder %s15, 0
    %p96 = por %p94, %p95
    %s97 = ssub.s32 %s16, %s28
    %s98 = ssub.s32 %s17, %s24
    %s99 = sor.u32 %s97, %s98
    %p100 = scmp.eq.s32.totalorder %s99, 0
    %s102 = sadd.s32 %s101, 1
    %s103 = scalar_select %p100, %s101, %s102
    %p106 = pneg %p100
    %p107 = scmp.eq.s32.totalorder %s9, 3
    %p108 = por %p106, %p107
    %p109 = scmp.ne.s32.totalorder %s101, %s104
    %p110 = scmp.eq.s32.totalorder %s9, 0
    %p111 = por %p109, %p110
    %p112 = scmp.ne.s32.totalorder %s101, %s104
    %p113 = scmp.eq.s32.totalorder %s14, 3
    %p114 = por %p112, %p113
    %p115 = scmp.ne.s32.totalorder %s104, %s105
    %p116 = scmp.eq.s32.totalorder %s14, 0
    %p117 = por %p115, %p116
    %p118 = scmp.ne.s32.totalorder %s104, %s105
    %p119 = scmp.eq.s32.totalorder %s15, 3
    %p120 = por %p118, %p119
    %p122 = scmp.ne.s32.totalorder %s105, %s121
    %p123 = scmp.eq.s32.totalorder %s15, 0
    %p124 = por %p122, %p123
    %p125 = scmp.le.s32.totalorder 1, %s9
    %p126 = scmp.lt.s32.totalorder %s9, 5
    %p127 = pnand %p125, %p126
    %p128 = pneg %p127
    // Predicated region
    $region9: #{tpu_custom_call.1} parent=5 // pred_check
      _
    $region10: #{tpu_custom_call.1} parent=5 // pred_check_branch
      %130 = sbr.rel (%p127) target = $region12
    $region11: #{tpu_custom_call.1} parent=5 // pred_region
      %s131 = ssub.s32 %s9, 1
      // Predicated region
      $region13: #{tpu_custom_call.1} parent=11 // pred_check
        %p132 = pneg %p68
      $region14: #{tpu_custom_call.1} parent=11 // pred_check_branch
        %134 = sbr.rel (%p132) target = $region16
      $region15: #{tpu_custom_call.1} parent=11 // pred_region
        _
      $region16: #{tpu_custom_call.1} parent=11 // pred_fallthru
        _
      // Predicated region
      $region17: #{tpu_custom_call.1} parent=11 // pred_check
        %p135 = pneg %p89
      $region18: #{tpu_custom_call.1} parent=11 // pred_check_branch
        %137 = sbr.rel (%p135) target = $region20
      $region19: #{tpu_custom_call.1} parent=11 // pred_region
        _
      $region20: #{tpu_custom_call.1} parent=11 // pred_fallthru
        _
    $region12: #{tpu_custom_call.1} parent=5 // pred_fallthru
      _
    %p138 = scmp.lt.s32.totalorder %s9, 4
    // Predicated region
    $region21: #{tpu_custom_call.1} parent=5 // pred_check
      %p139 = pneg %p138
    $region22: #{tpu_custom_call.1} parent=5 // pred_check_branch
      %141 = sbr.rel (%p139) target = $region24
    $region23: #{tpu_custom_call.1} parent=5 // pred_region
      // Predicated region
      $region25: #{tpu_custom_call.1} parent=23 // pred_check
        %p142 = pneg %p41
      $region26: #{tpu_custom_call.1} parent=23 // pred_check_branch
        %144 = sbr.rel (%p142) target = $region28
      $region27: #{tpu_custom_call.1} parent=23 // pred_region
        %p145 = scmp.lt.s32.totalorder %s16, 1
        %s146 = scalar_select %p145, %s16, 1
        %s147 = smul.addr %s146, 48
        %s148 = smul.addr %s147, 4
        %s149 = scalar_lea.vmem %s0, %s148
      $region28: #{tpu_custom_call.1} parent=23 // pred_fallthru
        _
    $region24: #{tpu_custom_call.1} parent=5 // pred_fallthru
      _
    %p150 = scmp.le.s32.totalorder 1, %s9
    %p151 = scmp.lt.s32.totalorder %s9, 5
    %p152 = pnand %p150, %p151
    %p153 = pneg %p152
    // Predicated region
    $region29: #{tpu_custom_call.1} parent=5 // pred_check
      _
    $region30: #{tpu_custom_call.1} parent=5 // pred_check_branch
      %155 = sbr.rel (%p152) target = $region32
    $region31: #{tpu_custom_call.1} parent=5 // pred_region
      %s156 = ssub.s32 %s9, 1
      %p157 = scmp.lt.s32.totalorder %s18, 1
      %s158 = scalar_select %p157, %s18, 1
      %s159 = smul.addr %s158, 48
      %s160 = smul.addr %s159, 4
      %s161 = scalar_lea.vmem %s0, %s160
      %p162 = pneg %p47
      %p163 = pneg %p44
      %p164 = pneg %p68
      %p165 = pneg %p65
      %p166 = pneg %p89
      %p167 = pneg %p86
      %p168 = pneg %p117
      %p169 = pneg %p114
      %s170 = smul.u32 8, %s19
      %p171 = scmp.lt.s32.totalorder %s18, 1
      %s172 = scalar_select %p171, %s18, 1
      %p173 = scmp.lt.s32.totalorder %s170, 15
      %s174 = scalar_select %p173, %s170, 15
      %s175 = smul.addr %s174, 2
      %s176 = smul.addr %s172, 32
      %s177 = sadd.s32 %s175, %s176
      %s178 = smul.addr %s177, 8
      %s179 = scalar_lea.vmem %s3, %s178
      %p180 = scmp.lt.s32.totalorder %s18, 1
      %s181 = scalar_select %p180, %s18, 1
      %s182 = smul.addr %s181, 48
      %s183 = smul.addr %s182, 4
      %s184 = scalar_lea.vmem %s0, %s183
      %s185 = smul.u32 8, %s19
      %p186 = scmp.lt.s32.totalorder %s18, 1
      %s187 = scalar_select %p186, %s18, 1
      %p188 = scmp.lt.s32.totalorder %s185, 15
      %s189 = scalar_select %p188, %s185, 15
      %s190 = smul.addr %s189, 2
      %s191 = smul.addr %s187, 32
      %s192 = sadd.s32 %s190, %s191
      %s193 = smul.addr %s192, 8
      %s194 = scalar_lea.vmem %s3, %s193
      %s195 = smul.u32 8, %s19
      %s197 = smul.u32 %s19, 8
      %s198 = smul.u32 %s197, 2
      %s199 = smul.addr %s198, 4
      %s200 = scalar_lea.vmem %s184, %s199
      %v201 = vld [vmem:[%s200] sm:$0xf]
      %v202 = vld [vmem:[%s200 + $0x4] sm:$0xf]
      %v203 = vld [vmem:[%s200 + $0x8] sm:$0xf]
      %v204 = vld [vmem:[%s200 + $0xc] sm:$0xf]
      %v205 = vld [vmem:[%s200 + $0x10] sm:$0xf]
      %v206 = vld [vmem:[%s200 + $0x14] sm:$0xf]
      %v207 = vld [vmem:[%s200 + $0x18] sm:$0xf]
      %v208 = vld [vmem:[%s200 + $0x1c] sm:$0xf]
      %v209 = vld [vmem:[%s200 + $0x20] sm:$0xf]
      %v210 = vld [vmem:[%s200 + $0x24] sm:$0xf]
      %v211 = vld [vmem:[%s200 + $0x28] sm:$0xf]
      %v212 = vld [vmem:[%s200 + $0x2c] sm:$0xf]
      %v213 = vld [vmem:[%s200 + $0x30] sm:$0xf]
      %v214 = vld [vmem:[%s200 + $0x34] sm:$0xf]
      %v215 = vld [vmem:[%s200 + $0x38] sm:$0xf]
      %v216 = vld [vmem:[%s200 + $0x3c] sm:$0xf]
      %s217 = sadd.s32 %s197, 1
      %s218 = smul.u32 %s217, 2
      %s219 = smul.addr %s218, 4
      %s220 = scalar_lea.vmem %s184, %s219
      %v221 = vld [vmem:[%s220] sm:$0xf]
      %v222 = vld [vmem:[%s220 + $0x4] sm:$0xf]
      %v223 = vld [vmem:[%s220 + $0x8] sm:$0xf]
      %v224 = vld [vmem:[%s220 + $0xc] sm:$0xf]
      %v225 = vld [vmem:[%s220 + $0x10] sm:$0xf]
      %v226 = vld [vmem:[%s220 + $0x14] sm:$0xf]
      %v227 = vld [vmem:[%s220 + $0x18] sm:$0xf]
      %v228 = vld [vmem:[%s220 + $0x1c] sm:$0xf]
      %v229 = vld [vmem:[%s220 + $0x20] sm:$0xf]
      %v230 = vld [vmem:[%s220 + $0x24] sm:$0xf]
      %v231 = vld [vmem:[%s220 + $0x28] sm:$0xf]
      %v232 = vld [vmem:[%s220 + $0x2c] sm:$0xf]
      %v233 = vld [vmem:[%s220 + $0x30] sm:$0xf]
      %v234 = vld [vmem:[%s220 + $0x34] sm:$0xf]
      %v235 = vld [vmem:[%s220 + $0x38] sm:$0xf]
      %v236 = vld [vmem:[%s220 + $0x3c] sm:$0xf]
      %s237 = sadd.s32 %s197, 2
      %s238 = smul.u32 %s237, 2
      %s239 = smul.addr %s238, 4
      %s240 = scalar_lea.vmem %s184, %s239
      %v241 = vld [vmem:[%s240] sm:$0xf]
      %v242 = vld [vmem:[%s240 + $0x4] sm:$0xf]
      %v243 = vld [vmem:[%s240 + $0x8] sm:$0xf]
      %v244 = vld [vmem:[%s240 + $0xc] sm:$0xf]
      %v245 = vld [vmem:[%s240 + $0x10] sm:$0xf]
      %v246 = vld [vmem:[%s240 + $0x14] sm:$0xf]
      %v247 = vld [vmem:[%s240 + $0x18] sm:$0xf]
      %v248 = vld [vmem:[%s240 + $0x1c] sm:$0xf]
      %v249 = vld [vmem:[%s240 + $0x20] sm:$0xf]
      %v250 = vld [vmem:[%s240 + $0x24] sm:$0xf]
      %v251 = vld [vmem:[%s240 + $0x28] sm:$0xf]
      %v252 = vld [vmem:[%s240 + $0x2c] sm:$0xf]
      %v253 = vld [vmem:[%s240 + $0x30] sm:$0xf]
      %v254 = vld [vmem:[%s240 + $0x34] sm:$0xf]
      %v255 = vld [vmem:[%s240 + $0x38] sm:$0xf]
      %v256 = vld [vmem:[%s240 + $0x3c] sm:$0xf]
      %s257 = sadd.s32 %s197, 3
      %s258 = smul.u32 %s257, 2
      %s259 = smul.addr %s258, 4
      %s260 = scalar_lea.vmem %s184, %s259
      %v261 = vld [vmem:[%s260] sm:$0xf]
      %v262 = vld [vmem:[%s260 + $0x4] sm:$0xf]
      %v263 = vld [vmem:[%s260 + $0x8] sm:$0xf]
      %v264 = vld [vmem:[%s260 + $0xc] sm:$0xf]
      %v265 = vld [vmem:[%s260 + $0x10] sm:$0xf]
      %v266 = vld [vmem:[%s260 + $0x14] sm:$0xf]
      %v267 = vld [vmem:[%s260 + $0x18] sm:$0xf]
      %v268 = vld [vmem:[%s260 + $0x1c] sm:$0xf]
      %v269 = vld [vmem:[%s260 + $0x20] sm:$0xf]
      %v270 = vld [vmem:[%s260 + $0x24] sm:$0xf]
      %v271 = vld [vmem:[%s260 + $0x28] sm:$0xf]
      %v272 = vld [vmem:[%s260 + $0x2c] sm:$0xf]
      %v273 = vld [vmem:[%s260 + $0x30] sm:$0xf]
      %v274 = vld [vmem:[%s260 + $0x34] sm:$0xf]
      %v275 = vld [vmem:[%s260 + $0x38] sm:$0xf]
      %v276 = vld [vmem:[%s260 + $0x3c] sm:$0xf]
      %s277 = sadd.s32 %s197, 4
      %s278 = smul.u32 %s277, 2
      %s279 = smul.addr %s278, 4
      %s280 = scalar_lea.vmem %s184, %s279
      %v281 = vld [vmem:[%s280] sm:$0xf]
      %v282 = vld [vmem:[%s280 + $0x4] sm:$0xf]
      %v283 = vld [vmem:[%s280 + $0x8] sm:$0xf]
      %v284 = vld [vmem:[%s280 + $0xc] sm:$0xf]
      %v285 = vld [vmem:[%s280 + $0x10] sm:$0xf]
      %v286 = vld [vmem:[%s280 + $0x14] sm:$0xf]
      %v287 = vld [vmem:[%s280 + $0x18] sm:$0xf]
      %v288 = vld [vmem:[%s280 + $0x1c] sm:$0xf]
      %v289 = vld [vmem:[%s280 + $0x20] sm:$0xf]
      %v290 = vld [vmem:[%s280 + $0x24] sm:$0xf]
      %v291 = vld [vmem:[%s280 + $0x28] sm:$0xf]
      %v292 = vld [vmem:[%s280 + $0x2c] sm:$0xf]
      %v293 = vld [vmem:[%s280 + $0x30] sm:$0xf]
      %v294 = vld [vmem:[%s280 + $0x34] sm:$0xf]
      %v295 = vld [vmem:[%s280 + $0x38] sm:$0xf]
      %v296 = vld [vmem:[%s280 + $0x3c] sm:$0xf]
      %s297 = sadd.s32 %s197, 5
      %s298 = smul.u32 %s297, 2
      %s299 = smul.addr %s298, 4
      %s300 = scalar_lea.vmem %s184, %s299
      %v301 = vld [vmem:[%s300] sm:$0xf]
      %v302 = vld [vmem:[%s300 + $0x4] sm:$0xf]
      %v303 = vld [vmem:[%s300 + $0x8] sm:$0xf]
      %v304 = vld [vmem:[%s300 + $0xc] sm:$0xf]
      %v305 = vld [vmem:[%s300 + $0x10] sm:$0xf]
      %v306 = vld [vmem:[%s300 + $0x14] sm:$0xf]
      %v307 = vld [vmem:[%s300 + $0x18] sm:$0xf]
      %v308 = vld [vmem:[%s300 + $0x1c] sm:$0xf]
      %v309 = vld [vmem:[%s300 + $0x20] sm:$0xf]
      %v310 = vld [vmem:[%s300 + $0x24] sm:$0xf]
      %v311 = vld [vmem:[%s300 + $0x28] sm:$0xf]
      %v312 = vld [vmem:[%s300 + $0x2c] sm:$0xf]
      %v313 = vld [vmem:[%s300 + $0x30] sm:$0xf]
      %v314 = vld [vmem:[%s300 + $0x34] sm:$0xf]
      %v315 = vld [vmem:[%s300 + $0x38] sm:$0xf]
      %v316 = vld [vmem:[%s300 + $0x3c] sm:$0xf]
      %s317 = sadd.s32 %s197, 6
      %s318 = smul.u32 %s317, 2
      %s319 = smul.addr %s318, 4
      %s320 = scalar_lea.vmem %s184, %s319
      %v321 = vld [vmem:[%s320] sm:$0xf]
      %v322 = vld [vmem:[%s320 + $0x4] sm:$0xf]
      %v323 = vld [vmem:[%s320 + $0x8] sm:$0xf]
      %v324 = vld [vmem:[%s320 + $0xc] sm:$0xf]
      %v325 = vld [vmem:[%s320 + $0x10] sm:$0xf]
      %v326 = vld [vmem:[%s320 + $0x14] sm:$0xf]
      %v327 = vld [vmem:[%s320 + $0x18] sm:$0xf]
      %v328 = vld [vmem:[%s320 + $0x1c] sm:$0xf]
      %v329 = vld [vmem:[%s320 + $0x20] sm:$0xf]
      %v330 = vld [vmem:[%s320 + $0x24] sm:$0xf]
      %v331 = vld [vmem:[%s320 + $0x28] sm:$0xf]
      %v332 = vld [vmem:[%s320 + $0x2c] sm:$0xf]
      %v333 = vld [vmem:[%s320 + $0x30] sm:$0xf]
      %v334 = vld [vmem:[%s320 + $0x34] sm:$0xf]
      %v335 = vld [vmem:[%s320 + $0x38] sm:$0xf]
      %v336 = vld [vmem:[%s320 + $0x3c] sm:$0xf]
      %s337 = sadd.s32 %s197, 7
      %s338 = smul.u32 %s337, 2
      %s339 = smul.addr %s338, 4
      %s340 = scalar_lea.vmem %s184, %s339
      %v341 = vld [vmem:[%s340] sm:$0xf]
      %v342 = vld [vmem:[%s340 + $0x4] sm:$0xf]
      %v343 = vld [vmem:[%s340 + $0x8] sm:$0xf]
      %v344 = vld [vmem:[%s340 + $0xc] sm:$0xf]
      %v345 = vld [vmem:[%s340 + $0x10] sm:$0xf]
      %v346 = vld [vmem:[%s340 + $0x14] sm:$0xf]
      %v347 = vld [vmem:[%s340 + $0x18] sm:$0xf]
      %v348 = vld [vmem:[%s340 + $0x1c] sm:$0xf]
      %v349 = vld [vmem:[%s340 + $0x20] sm:$0xf]
      %v350 = vld [vmem:[%s340 + $0x24] sm:$0xf]
      %v351 = vld [vmem:[%s340 + $0x28] sm:$0xf]
      %v352 = vld [vmem:[%s340 + $0x2c] sm:$0xf]
      %v353 = vld [vmem:[%s340 + $0x30] sm:$0xf]
      %v354 = vld [vmem:[%s340 + $0x34] sm:$0xf]
      %v355 = vld [vmem:[%s340 + $0x38] sm:$0xf]
      %v356 = vld [vmem:[%s340 + $0x3c] sm:$0xf]
      %s357 = sadd.s32 %s197, 8
      %s358 = smul.u32 %s357, 2
      %s359 = smul.addr %s358, 4
      %s360 = scalar_lea.vmem %s184, %s359
      %v361 = vld [vmem:[%s360] sm:$0xf]
      %v362 = vld [vmem:[%s360 + $0x4] sm:$0xf]
      %v363 = vld [vmem:[%s360 + $0x8] sm:$0xf]
      %v364 = vld [vmem:[%s360 + $0xc] sm:$0xf]
      %v365 = vld [vmem:[%s360 + $0x10] sm:$0xf]
      %v366 = vld [vmem:[%s360 + $0x14] sm:$0xf]
      %v367 = vld [vmem:[%s360 + $0x18] sm:$0xf]
      %v368 = vld [vmem:[%s360 + $0x1c] sm:$0xf]
      %v369 = vld [vmem:[%s360 + $0x20] sm:$0xf]
      %v370 = vld [vmem:[%s360 + $0x24] sm:$0xf]
      %v371 = vld [vmem:[%s360 + $0x28] sm:$0xf]
      %v372 = vld [vmem:[%s360 + $0x2c] sm:$0xf]
      %v373 = vld [vmem:[%s360 + $0x30] sm:$0xf]
      %v374 = vld [vmem:[%s360 + $0x34] sm:$0xf]
      %v375 = vld [vmem:[%s360 + $0x38] sm:$0xf]
      %v376 = vld [vmem:[%s360 + $0x3c] sm:$0xf]
      %v393 = vunpack.c.l.b16 %v201
      %v394 = vunpack.c.l.b16 %v202
      %v395 = vunpack.c.l.b16 %v203
      %v396 = vunpack.c.l.b16 %v204
      %v397 = vunpack.c.l.b16 %v205
      %v398 = vunpack.c.l.b16 %v206
      %v399 = vunpack.c.l.b16 %v207
      %v400 = vunpack.c.l.b16 %v208
      %v401 = vunpack.c.l.b16 %v209
      %v402 = vunpack.c.l.b16 %v210
      %v403 = vunpack.c.l.b16 %v211
      %v404 = vunpack.c.l.b16 %v212
      %v405 = vunpack.c.l.b16 %v213
      %v406 = vunpack.c.l.b16 %v214
      %v407 = vunpack.c.l.b16 %v215
      %v408 = vunpack.c.l.b16 %v216
      %v409 = vpack.c.b16 %v394, %v393
      %v410 = vpack.c.b16 %v396, %v395
      %v411 = vpack.c.b16 %v398, %v397
      %v412 = vpack.c.b16 %v400, %v399
      %v413 = vpack.c.b16 %v402, %v401
      %v414 = vpack.c.b16 %v404, %v403
      %v415 = vpack.c.b16 %v406, %v405
      %v416 = vpack.c.b16 %v408, %v407
      %v433 = vunpack.c.l.b16 %v221
      %v434 = vunpack.c.l.b16 %v222
      %v435 = vunpack.c.l.b16 %v223
      %v436 = vunpack.c.l.b16 %v224
      %v437 = vunpack.c.l.b16 %v225
      %v438 = vunpack.c.l.b16 %v226
      %v439 = vunpack.c.l.b16 %v227
      %v440 = vunpack.c.l.b16 %v228
      %v441 = vunpack.c.l.b16 %v229
      %v442 = vunpack.c.l.b16 %v230
      %v443 = vunpack.c.l.b16 %v231
      %v444 = vunpack.c.l.b16 %v232
      %v445 = vunpack.c.l.b16 %v233
      %v446 = vunpack.c.l.b16 %v234
      %v447 = vunpack.c.l.b16 %v235
      %v448 = vunpack.c.l.b16 %v236
      %v449 = vpack.c.b16 %v434, %v433
      %v450 = vpack.c.b16 %v436, %v435
      %v451 = vpack.c.b16 %v438, %v437
      %v452 = vpack.c.b16 %v440, %v439
      %v453 = vpack.c.b16 %v442, %v441
      %v454 = vpack.c.b16 %v444, %v443
      %v455 = vpack.c.b16 %v446, %v445
      %v456 = vpack.c.b16 %v448, %v447
      %457 = vrot.lane.b32.xlu0 %v449, 4
      %v458 = vpop.permute.xlu0 %457
      %459 = vrot.lane.b32.xlu0 %v450, 4
      %v460 = vpop.permute.xlu0 %459
      %461 = vrot.lane.b32.xlu0 %v451, 4
      %v462 = vpop.permute.xlu0 %461
      %463 = vrot.lane.b32.xlu0 %v452, 4
      %v464 = vpop.permute.xlu0 %463
      %465 = vrot.lane.b32.xlu0 %v453, 4
      %v466 = vpop.permute.xlu0 %465
      %467 = vrot.lane.b32.xlu0 %v454, 4
      %v468 = vpop.permute.xlu0 %467
      %469 = vrot.lane.b32.xlu0 %v455, 4
      %v470 = vpop.permute.xlu0 %469
      %471 = vrot.lane.b32.xlu0 %v456, 4
      %v472 = vpop.permute.xlu0 %471
      %v489 = vunpack.c.l.b16 %v241
      %v490 = vunpack.c.l.b16 %v242
      %v491 = vunpack.c.l.b16 %v243
      %v492 = vunpack.c.l.b16 %v244
      %v493 = vunpack.c.l.b16 %v245
      %v494 = vunpack.c.l.b16 %v246
      %v495 = vunpack.c.l.b16 %v247
      %v496 = vunpack.c.l.b16 %v248
      %v497 = vunpack.c.l.b16 %v249
      %v498 = vunpack.c.l.b16 %v250
      %v499 = vunpack.c.l.b16 %v251
      %v500 = vunpack.c.l.b16 %v252
      %v501 = vunpack.c.l.b16 %v253
      %v502 = vunpack.c.l.b16 %v254
      %v503 = vunpack.c.l.b16 %v255
      %v504 = vunpack.c.l.b16 %v256
      %v505 = vpack.c.b16 %v490, %v489
      %v506 = vpack.c.b16 %v492, %v491
      %v507 = vpack.c.b16 %v494, %v493
      %v508 = vpack.c.b16 %v496, %v495
      %v509 = vpack.c.b16 %v498, %v497
      %v510 = vpack.c.b16 %v500, %v499
      %v511 = vpack.c.b16 %v502, %v501
      %v512 = vpack.c.b16 %v504, %v503
      %513 = vrot.lane.b32.xlu0 %v505, 8
      %v514 = vpop.permute.xlu0 %513
      %515 = vrot.lane.b32.xlu0 %v506, 8
      %v516 = vpop.permute.xlu0 %515
      %517 = vrot.lane.b32.xlu0 %v507, 8
      %v518 = vpop.permute.xlu0 %517
      %519 = vrot.lane.b32.xlu0 %v508, 8
      %v520 = vpop.permute.xlu0 %519
      %521 = vrot.lane.b32.xlu0 %v509, 8
      %v522 = vpop.permute.xlu0 %521
      %523 = vrot.lane.b32.xlu0 %v510, 8
      %v524 = vpop.permute.xlu0 %523
      %525 = vrot.lane.b32.xlu0 %v511, 8
      %v526 = vpop.permute.xlu0 %525
      %527 = vrot.lane.b32.xlu0 %v512, 8
      %v528 = vpop.permute.xlu0 %527
      %v545 = vunpack.c.l.b16 %v261
      %v546 = vunpack.c.l.b16 %v262
      %v547 = vunpack.c.l.b16 %v263
      %v548 = vunpack.c.l.b16 %v264
      %v549 = vunpack.c.l.b16 %v265
      %v550 = vunpack.c.l.b16 %v266
      %v551 = vunpack.c.l.b16 %v267
      %v552 = vunpack.c.l.b16 %v268
      %v553 = vunpack.c.l.b16 %v269
      %v554 = vunpack.c.l.b16 %v270
      %v555 = vunpack.c.l.b16 %v271
      %v556 = vunpack.c.l.b16 %v272
      %v557 = vunpack.c.l.b16 %v273
      %v558 = vunpack.c.l.b16 %v274
      %v559 = vunpack.c.l.b16 %v275
      %v560 = vunpack.c.l.b16 %v276
      %v561 = vpack.c.b16 %v546, %v545
      %v562 = vpack.c.b16 %v548, %v547
      %v563 = vpack.c.b16 %v550, %v549
      %v564 = vpack.c.b16 %v552, %v551
      %v565 = vpack.c.b16 %v554, %v553
      %v566 = vpack.c.b16 %v556, %v555
      %v567 = vpack.c.b16 %v558, %v557
      %v568 = vpack.c.b16 %v560, %v559
      %569 = vrot.lane.b32.xlu0 %v561, 12
      %v570 = vpop.permute.xlu0 %569
      %571 = vrot.lane.b32.xlu0 %v562, 12
      %v572 = vpop.permute.xlu0 %571
      %573 = vrot.lane.b32.xlu0 %v563, 12
      %v574 = vpop.permute.xlu0 %573
      %575 = vrot.lane.b32.xlu0 %v564, 12
      %v576 = vpop.permute.xlu0 %575
      %577 = vrot.lane.b32.xlu0 %v565, 12
      %v578 = vpop.permute.xlu0 %577
      %579 = vrot.lane.b32.xlu0 %v566, 12
      %v580 = vpop.permute.xlu0 %579
      %581 = vrot.lane.b32.xlu0 %v567, 12
      %v582 = vpop.permute.xlu0 %581
      %583 = vrot.lane.b32.xlu0 %v568, 12
      %v584 = vpop.permute.xlu0 %583
      %v601 = vunpack.c.l.b16 %v281
      %v602 = vunpack.c.l.b16 %v282
      %v603 = vunpack.c.l.b16 %v283
      %v604 = vunpack.c.l.b16 %v284
      %v605 = vunpack.c.l.b16 %v285
      %v606 = vunpack.c.l.b16 %v286
      %v607 = vunpack.c.l.b16 %v287
      %v608 = vunpack.c.l.b16 %v288
      %v609 = vunpack.c.l.b16 %v289
      %v610 = vunpack.c.l.b16 %v290
      %v611 = vunpack.c.l.b16 %v291
      %v612 = vunpack.c.l.b16 %v292
      %v613 = vunpack.c.l.b16 %v293
      %v614 = vunpack.c.l.b16 %v294
      %v615 = vunpack.c.l.b16 %v295
      %v616 = vunpack.c.l.b16 %v296
      %v617 = vpack.c.b16 %v602, %v601
      %v618 = vpack.c.b16 %v604, %v603
      %v619 = vpack.c.b16 %v606, %v605
      %v620 = vpack.c.b16 %v608, %v607
      %v621 = vpack.c.b16 %v610, %v609
      %v622 = vpack.c.b16 %v612, %v611
      %v623 = vpack.c.b16 %v614, %v613
      %v624 = vpack.c.b16 %v616, %v615
      %625 = vrot.lane.b32.xlu0 %v617, 16
      %v626 = vpop.permute.xlu0 %625
      %627 = vrot.lane.b32.xlu0 %v618, 16
      %v628 = vpop.permute.xlu0 %627
      %629 = vrot.lane.b32.xlu0 %v619, 16
      %v630 = vpop.permute.xlu0 %629
      %631 = vrot.lane.b32.xlu0 %v620, 16
      %v632 = vpop.permute.xlu0 %631
      %633 = vrot.lane.b32.xlu0 %v621, 16
      %v634 = vpop.permute.xlu0 %633
      %635 = vrot.lane.b32.xlu0 %v622, 16
      %v636 = vpop.permute.xlu0 %635
      %637 = vrot.lane.b32.xlu0 %v623, 16
      %v638 = vpop.permute.xlu0 %637
      %639 = vrot.lane.b32.xlu0 %v624, 16
      %v640 = vpop.permute.xlu0 %639
      %v657 = vunpack.c.l.b16 %v301
      %v658 = vunpack.c.l.b16 %v302
      %v659 = vunpack.c.l.b16 %v303
      %v660 = vunpack.c.l.b16 %v304
      %v661 = vunpack.c.l.b16 %v305
      %v662 = vunpack.c.l.b16 %v306
      %v663 = vunpack.c.l.b16 %v307
      %v664 = vunpack.c.l.b16 %v308
      %v665 = vunpack.c.l.b16 %v309
      %v666 = vunpack.c.l.b16 %v310
      %v667 = vunpack.c.l.b16 %v311
      %v668 = vunpack.c.l.b16 %v312
      %v669 = vunpack.c.l.b16 %v313
      %v670 = vunpack.c.l.b16 %v314
      %v671 = vunpack.c.l.b16 %v315
      %v672 = vunpack.c.l.b16 %v316
      %v673 = vpack.c.b16 %v658, %v657
      %v674 = vpack.c.b16 %v660, %v659
      %v675 = vpack.c.b16 %v662, %v661
      %v676 = vpack.c.b16 %v664, %v663
      %v677 = vpack.c.b16 %v666, %v665
      %v678 = vpack.c.b16 %v668, %v667
      %v679 = vpack.c.b16 %v670, %v669
      %v680 = vpack.c.b16 %v672, %v671
      %681 = vrot.lane.b32.xlu0 %v673, 20
      %v682 = vpop.permute.xlu0 %681
      %683 = vrot.lane.b32.xlu0 %v674, 20
      %v684 = vpop.permute.xlu0 %683
      %685 = vrot.lane.b32.xlu0 %v675, 20
      %v686 = vpop.permute.xlu0 %685
      %687 = vrot.lane.b32.xlu0 %v676, 20
      %v688 = vpop.permute.xlu0 %687
      %689 = vrot.lane.b32.xlu0 %v677, 20
      %v690 = vpop.permute.xlu0 %689
      %691 = vrot.lane.b32.xlu0 %v678, 20
      %v692 = vpop.permute.xlu0 %691
      %693 = vrot.lane.b32.xlu0 %v679, 20
      %v694 = vpop.permute.xlu0 %693
      %695 = vrot.lane.b32.xlu0 %v680, 20
      %v696 = vpop.permute.xlu0 %695
      %v713 = vunpack.c.l.b16 %v321
      %v714 = vunpack.c.l.b16 %v322
      %v715 = vunpack.c.l.b16 %v323
      %v716 = vunpack.c.l.b16 %v324
      %v717 = vunpack.c.l.b16 %v325
      %v718 = vunpack.c.l.b16 %v326
      %v719 = vunpack.c.l.b16 %v327
      %v720 = vunpack.c.l.b16 %v328
      %v721 = vunpack.c.l.b16 %v329
      %v722 = vunpack.c.l.b16 %v330
      %v723 = vunpack.c.l.b16 %v331
      %v724 = vunpack.c.l.b16 %v332
      %v725 = vunpack.c.l.b16 %v333
      %v726 = vunpack.c.l.b16 %v334
      %v727 = vunpack.c.l.b16 %v335
      %v728 = vunpack.c.l.b16 %v336
      %v729 = vpack.c.b16 %v714, %v713
      %v730 = vpack.c.b16 %v716, %v715
      %v731 = vpack.c.b16 %v718, %v717
      %v732 = vpack.c.b16 %v720, %v719
      %v733 = vpack.c.b16 %v722, %v721
      %v734 = vpack.c.b16 %v724, %v723
      %v735 = vpack.c.b16 %v726, %v725
      %v736 = vpack.c.b16 %v728, %v727
      %737 = vrot.lane.b32.xlu0 %v729, 24
      %v738 = vpop.permute.xlu0 %737
      %739 = vrot.lane.b32.xlu0 %v730, 24
      %v740 = vpop.permute.xlu0 %739
      %741 = vrot.lane.b32.xlu0 %v731, 24
      %v742 = vpop.permute.xlu0 %741
      %743 = vrot.lane.b32.xlu0 %v732, 24
      %v744 = vpop.permute.xlu0 %743
      %745 = vrot.lane.b32.xlu0 %v733, 24
      %v746 = vpop.permute.xlu0 %745
      %747 = vrot.lane.b32.xlu0 %v734, 24
      %v748 = vpop.permute.xlu0 %747
      %749 = vrot.lane.b32.xlu0 %v735, 24
      %v750 = vpop.permute.xlu0 %749
      %751 = vrot.lane.b32.xlu0 %v736, 24
      %v752 = vpop.permute.xlu0 %751
      %v769 = vunpack.c.l.b16 %v341
      %v770 = vunpack.c.l.b16 %v342
      %v771 = vunpack.c.l.b16 %v343
      %v772 = vunpack.c.l.b16 %v344
      %v773 = vunpack.c.l.b16 %v345
      %v774 = vunpack.c.l.b16 %v346
      %v775 = vunpack.c.l.b16 %v347
      %v776 = vunpack.c.l.b16 %v348
      %v777 = vunpack.c.l.b16 %v349
      %v778 = vunpack.c.l.b16 %v350
      %v779 = vunpack.c.l.b16 %v351
      %v780 = vunpack.c.l.b16 %v352
      %v781 = vunpack.c.l.b16 %v353
      %v782 = vunpack.c.l.b16 %v354
      %v783 = vunpack.c.l.b16 %v355
      %v784 = vunpack.c.l.b16 %v356
      %v785 = vpack.c.b16 %v770, %v769
      %v786 = vpack.c.b16 %v772, %v771
      %v787 = vpack.c.b16 %v774, %v773
      %v788 = vpack.c.b16 %v776, %v775
      %v789 = vpack.c.b16 %v778, %v777
      %v790 = vpack.c.b16 %v780, %v779
      %v791 = vpack.c.b16 %v782, %v781
      %v792 = vpack.c.b16 %v784, %v783
      %793 = vrot.lane.b32.xlu0 %v785, 28
      %v794 = vpop.permute.xlu0 %793
      %795 = vrot.lane.b32.xlu0 %v786, 28
      %v796 = vpop.permute.xlu0 %795
      %797 = vrot.lane.b32.xlu0 %v787, 28
      %v798 = vpop.permute.xlu0 %797
      %799 = vrot.lane.b32.xlu0 %v788, 28
      %v800 = vpop.permute.xlu0 %799
      %801 = vrot.lane.b32.xlu0 %v789, 28
      %v802 = vpop.permute.xlu0 %801
      %803 = vrot.lane.b32.xlu0 %v790, 28
      %v804 = vpop.permute.xlu0 %803
      %805 = vrot.lane.b32.xlu0 %v791, 28
      %v806 = vpop.permute.xlu0 %805
      %807 = vrot.lane.b32.xlu0 %v792, 28
      %v808 = vpop.permute.xlu0 %807
      %v825 = vunpack.c.l.b16 %v361
      %v826 = vunpack.c.l.b16 %v362
      %v827 = vunpack.c.l.b16 %v363
      %v828 = vunpack.c.l.b16 %v364
      %v829 = vunpack.c.l.b16 %v365
      %v830 = vunpack.c.l.b16 %v366
      %v831 = vunpack.c.l.b16 %v367
      %v832 = vunpack.c.l.b16 %v368
      %v833 = vunpack.c.l.b16 %v369
      %v834 = vunpack.c.l.b16 %v370
      %v835 = vunpack.c.l.b16 %v371
      %v836 = vunpack.c.l.b16 %v372
      %v837 = vunpack.c.l.b16 %v373
      %v838 = vunpack.c.l.b16 %v374
      %v839 = vunpack.c.l.b16 %v375
      %v840 = vunpack.c.l.b16 %v376
      %v841 = vpack.c.b16 %v826, %v825
      %v842 = vpack.c.b16 %v828, %v827
      %v843 = vpack.c.b16 %v830, %v829
      %v844 = vpack.c.b16 %v832, %v831
      %v845 = vpack.c.b16 %v834, %v833
      %v846 = vpack.c.b16 %v836, %v835
      %v847 = vpack.c.b16 %v838, %v837
      %v848 = vpack.c.b16 %v840, %v839
      %849 = vrot.lane.b32.xlu0 %v841, 32
      %v850 = vpop.permute.xlu0 %849
      %851 = vrot.lane.b32.xlu0 %v842, 32
      %v852 = vpop.permute.xlu0 %851
      %853 = vrot.lane.b32.xlu0 %v843, 32
      %v854 = vpop.permute.xlu0 %853
      %855 = vrot.lane.b32.xlu0 %v844, 32
      %v856 = vpop.permute.xlu0 %855
      %857 = vrot.lane.b32.xlu0 %v845, 32
      %v858 = vpop.permute.xlu0 %857
      %859 = vrot.lane.b32.xlu0 %v846, 32
      %v860 = vpop.permute.xlu0 %859
      %861 = vrot.lane.b32.xlu0 %v847, 32
      %v862 = vpop.permute.xlu0 %861
      %863 = vrot.lane.b32.xlu0 %v848, 32
      %v864 = vpop.permute.xlu0 %863
      %vm865 = vcmask 31744
      %v868 = vsel %vm865, %v409, %v458
      %v871 = vsel %vm865, %v410, %v460
      %v874 = vsel %vm865, %v411, %v462
      %v877 = vsel %vm865, %v412, %v464
      %v880 = vsel %vm865, %v413, %v466
      %v883 = vsel %vm865, %v414, %v468
      %v886 = vsel %vm865, %v415, %v470
      %v889 = vsel %vm865, %v416, %v472
      %vm890 = vcmask 64512
      %v892 = vsel %vm890, %v868, %v514
      %v894 = vsel %vm890, %v871, %v516
      %v896 = vsel %vm890, %v874, %v518
      %v898 = vsel %vm890, %v877, %v520
      %v900 = vsel %vm890, %v880, %v522
      %v902 = vsel %vm890, %v883, %v524
      %v904 = vsel %vm890, %v886, %v526
      %v906 = vsel %vm890, %v889, %v528
      %vm907 = vcmask 97280
      %v909 = vsel %vm907, %v892, %v570
      %v911 = vsel %vm907, %v894, %v572
      %v913 = vsel %vm907, %v896, %v574
      %v915 = vsel %vm907, %v898, %v576
      %v917 = vsel %vm907, %v900, %v578
      %v919 = vsel %vm907, %v902, %v580
      %v921 = vsel %vm907, %v904, %v582
      %v923 = vsel %vm907, %v906, %v584
      %vm924 = vcmask 130048
      %v926 = vsel %vm924, %v909, %v626
      %v928 = vsel %vm924, %v911, %v628
      %v930 = vsel %vm924, %v913, %v630
      %v932 = vsel %vm924, %v915, %v632
      %v934 = vsel %vm924, %v917, %v634
      %v936 = vsel %vm924, %v919, %v636
      %v938 = vsel %vm924, %v921, %v638
      %v940 = vsel %vm924, %v923, %v640
      %vm941 = vcmask 162816
      %v943 = vsel %vm941, %v926, %v682
      %v945 = vsel %vm941, %v928, %v684
      %v947 = vsel %vm941, %v930, %v686
      %v949 = vsel %vm941, %v932, %v688
      %v951 = vsel %vm941, %v934, %v690
      %v953 = vsel %vm941, %v936, %v692
      %v955 = vsel %vm941, %v938, %v694
      %v957 = vsel %vm941, %v940, %v696
      %vm958 = vcmask 195584
      %v960 = vsel %vm958, %v943, %v738
      %v962 = vsel %vm958, %v945, %v740
      %v964 = vsel %vm958, %v947, %v742
      %v966 = vsel %vm958, %v949, %v744
      %v968 = vsel %vm958, %v951, %v746
      %v970 = vsel %vm958, %v953, %v748
      %v972 = vsel %vm958, %v955, %v750
      %v974 = vsel %vm958, %v957, %v752
      %vm975 = vcmask 228352
      %v977 = vsel %vm975, %v960, %v794
      %v979 = vsel %vm975, %v962, %v796
      %v981 = vsel %vm975, %v964, %v798
      %v983 = vsel %vm975, %v966, %v800
      %v985 = vsel %vm975, %v968, %v802
      %v987 = vsel %vm975, %v970, %v804
      %v989 = vsel %vm975, %v972, %v806
      %v991 = vsel %vm975, %v974, %v808
      %vm992 = vcmask 261120
      %v994 = vsel %vm992, %v977, %v850
      %v996 = vsel %vm992, %v979, %v852
      %v998 = vsel %vm992, %v981, %v854
      %v1000 = vsel %vm992, %v983, %v856
      %v1002 = vsel %vm992, %v985, %v858
      %v1004 = vsel %vm992, %v987, %v860
      %v1006 = vsel %vm992, %v989, %v862
      %v1008 = vsel %vm992, %v991, %v864
      %v1009 = vld [vmem:[%s1] sm:$0xf]
      %v1010 = vld [vmem:[%s1 + $0x4] sm:$0xf]
      %v1011 = vld [vmem:[%s1 + $0x8] sm:$0xf]
      %v1012 = vld [vmem:[%s1 + $0xc] sm:$0xf]
      %v1013 = vld [vmem:[%s1 + $0x10] sm:$0x3]
      %v1014 = vld [vmem:[%s2] sm:$0x1]
      %v1016 = vperm.slane %v1014, 0
      %v1023 = vunpack.c.l.b16 %v1009
      %v1024 = vunpack.c.l.b16 %v1010
      %v1025 = vunpack.c.l.b16 %v1011
      %v1026 = vunpack.c.l.b16 %v1012
      %v1027 = vunpack.c.l.b16 %v1013
      %v1028 = vpack.c.b16 %v1024, %v1023
      %v1029 = vpack.c.b16 %v1026, %v1025
      %v1030 = vpack.c.b16 %v1027, %v1027
      %vm1033 = vcmask 293888
      %v1034 = vsel %vm1033, %v994, 0
      %v1036 = vsel %vm1033, %v996, 0
      %v1038 = vsel %vm1033, %v998, 0
      %v1040 = vsel %vm1033, %v1000, 0
      %v1042 = vsel %vm1033, %v1002, 0
      %v1044 = vsel %vm1033, %v1004, 0
      %v1046 = vsel %vm1033, %v1006, 0
      %v1048 = vsel %vm1033, %v1008, 0
      %vm1050 = vcmask 1041408
      %v1052 = vsel %vm1050, %v1030, 0
      %1054 = vmatpush.bf16.msra.mxu0 0
      %1055 = vmatpush.bf16.msra.mxu0 0
      %1056 = vmatpush.bf16.msra.mxu0 0
      %1057 = vmatpush.bf16.msra.mxu0 0
      %1058 = vmatpush.bf16.msra.mxu0 0
      %1059 = vmatpush.bf16.msra.mxu0 %v1052
      %1060 = vmatpush.bf16.msra.mxu0 %v1029
      %1061 = vmatpush.bf16.msra.mxu0 %v1028
      %1062 = vmatmul.bf16.gmra.mxu0 %v1034
      %v1063 = vpop.f32.mrf.mxu0
      %v1064 = vadd.f32 %v1016, %v1063
      %v1065 = vpop.f32.mrf.mxu0
      %v1066 = vadd.f32 %v1016, %v1065
      %1067 = vmatmul.bf16.gmra.mxu0 %v1036
      %v1068 = vpop.f32.mrf.mxu0
      %v1069 = vadd.f32 %v1016, %v1068
      %v1070 = vpop.f32.mrf.mxu0
      %v1071 = vadd.f32 %v1016, %v1070
      %1072 = vmatmul.bf16.gmra.mxu0 %v1038
      %v1073 = vpop.f32.mrf.mxu0
      %v1074 = vadd.f32 %v1016, %v1073
      %v1075 = vpop.f32.mrf.mxu0
      %v1076 = vadd.f32 %v1016, %v1075
      %1077 = vmatmul.bf16.gmra.mxu0 %v1040
      %v1078 = vpop.f32.mrf.mxu0
      %v1079 = vadd.f32 %v1016, %v1078
      %v1080 = vpop.f32.mrf.mxu0
      %v1081 = vadd.f32 %v1016, %v1080
      %1082 = vmatmul.bf16.gmra.mxu0 %v1042
      %v1083 = vpop.f32.mrf.mxu0
      %v1084 = vadd.f32 %v1016, %v1083
      %v1085 = vpop.f32.mrf.mxu0
      %v1086 = vadd.f32 %v1016, %v1085
      %1087 = vmatmul.bf16.gmra.mxu0 %v1044
      %v1088 = vpop.f32.mrf.mxu0
      %v1089 = vadd.f32 %v1016, %v1088
      %v1090 = vpop.f32.mrf.mxu0
      %v1091 = vadd.f32 %v1016, %v1090
      %1092 = vmatmul.bf16.gmra.mxu0 %v1046
      %v1093 = vpop.f32.mrf.mxu0
      %v1094 = vadd.f32 %v1016, %v1093
      %v1095 = vpop.f32.mrf.mxu0
      %v1096 = vadd.f32 %v1016, %v1095
      %1097 = vmatmul.bf16.gmra.mxu0 %v1048
      %v1098 = vpop.f32.mrf.mxu0
      %v1099 = vadd.f32 %v1016, %v1098
      %v1100 = vpop.f32.mrf.mxu0
      %v1101 = vadd.f32 %v1016, %v1100
      %1102 = vdwg.mxu0
      %1103 = vst.msk [vmem:[%s194] sm:$0xff] %vm890, %v1064
      %1104 = vst.msk [vmem:[%s194 + $0x8] sm:$0xff] %vm890, %v1066
      %1105 = vst.msk [vmem:[%s194 + $0x10] sm:$0xff] %vm890, %v1069
      %1106 = vst.msk [vmem:[%s194 + $0x18] sm:$0xff] %vm890, %v1071
      %1107 = vst.msk [vmem:[%s194 + $0x20] sm:$0xff] %vm890, %v1074
      %1108 = vst.msk [vmem:[%s194 + $0x28] sm:$0xff] %vm890, %v1076
      %1109 = vst.msk [vmem:[%s194 + $0x30] sm:$0xff] %vm890, %v1079
      %1110 = vst.msk [vmem:[%s194 + $0x38] sm:$0xff] %vm890, %v1081
      %1111 = vst.msk [vmem:[%s194 + $0x40] sm:$0xff] %vm890, %v1084
      %1112 = vst.msk [vmem:[%s194 + $0x48] sm:$0xff] %vm890, %v1086
      %1113 = vst.msk [vmem:[%s194 + $0x50] sm:$0xff] %vm890, %v1089
      %1114 = vst.msk [vmem:[%s194 + $0x58] sm:$0xff] %vm890, %v1091
      %1115 = vst.msk [vmem:[%s194 + $0x60] sm:$0xff] %vm890, %v1094
      %1116 = vst.msk [vmem:[%s194 + $0x68] sm:$0xff] %vm890, %v1096
      %1117 = vst.msk [vmem:[%s194 + $0x70] sm:$0xff] %vm890, %v1099
      %1118 = vst.msk [vmem:[%s194 + $0x78] sm:$0xff] %vm890, %v1101
      %s1119 = smul.u32 8, %s19
      %p1120 = scmp.lt.s32.totalorder %s18, 1
      %s1121 = scalar_select %p1120, %s18, 1
      %p1122 = scmp.lt.s32.totalorder %s1119, 15
      %s1123 = scalar_select %p1122, %s1119, 15
      %s1124 = smul.addr %s1123, 2
      %s1125 = smul.addr %s1121, 32
      %s1126 = sadd.s32 %s1124, %s1125
      %s1127 = smul.addr %s1126, 8
      %s1128 = scalar_lea.vmem %s3, %s1127
      // Predicated region
      $region33: #{tpu_custom_call.1} parent=31 // pred_check
        %p1129 = pneg %p114
      $region34: #{tpu_custom_call.1} parent=31 // pred_check_branch
        %1131 = sbr.rel (%p1129) target = $region36
      $region35: #{tpu_custom_call.1} parent=31 // pred_region
        %s1132 = smul.u32 8, %s19
      $region36: #{tpu_custom_call.1} parent=31 // pred_fallthru
        _
    $region32: #{tpu_custom_call.1} parent=5 // pred_fallthru
      _
    %p1133 = scmp.le.s32.totalorder 2, %s9
    // Predicated region
    $region37: #{tpu_custom_call.1} parent=5 // pred_check
      %p1134 = pneg %p1133
    $region38: #{tpu_custom_call.1} parent=5 // pred_check_branch
      %1136 = sbr.rel (%p1134) target = $region40
    $region39: #{tpu_custom_call.1} parent=5 // pred_region
      %s1137 = ssub.s32 %s9, 2
      // Predicated region
      $region41: #{tpu_custom_call.1} parent=39 // pred_check
        %p1138 = pneg %p120
      $region42: #{tpu_custom_call.1} parent=39 // pred_check_branch
        %1140 = sbr.rel (%p1138) target = $region44
      $region43: #{tpu_custom_call.1} parent=39 // pred_region
        %s1141 = smul.u32 8, %s21
        %p1142 = scmp.lt.s32.totalorder %s20, 1
        %s1143 = scalar_select %p1142, %s20, 1
        %p1144 = scmp.lt.s32.totalorder %s1141, 15
        %s1145 = scalar_select %p1144, %s1141, 15
        %s1146 = smul.addr %s1145, 2
        %s1147 = smul.addr %s1143, 32
        %s1148 = sadd.s32 %s1146, %s1147
        %s1149 = smul.addr %s1148, 8
        %s1150 = scalar_lea.vmem %s3, %s1149
      $region44: #{tpu_custom_call.1} parent=39 // pred_fallthru
        _
    $region40: #{tpu_custom_call.1} parent=5 // pred_fallthru
      _
  $region6: #{tpu_custom_call.1} parent=0 // loop_footer
    %s13 = sadd.s32 1, %s9
  $region7: #{tpu_custom_call.1} parent=0 // loop_footer_branch
    %8 = sbr.rel target = $region3
  $region8: #{tpu_custom_call.1} parent=0 // loop_exit
    _

</llo_original>
